<compile_context>
chip_gen: v7x
topology: tpu7x:2x2x1
jax: 0.10.0
libtpu: 0.0.40
codegen_flags: <defaults>
</compile_context>

<pallas_src>
import functools

import jax
import jax.numpy as jnp
from jax.experimental import pallas as pl
from jax.experimental.pallas import tpu as pltpu

_LANES = 128
_SUBLANES = 8


def _round_up(x, m):
    return ((x + m - 1) // m) * m


def pad_table(table):
    """Pad the (V, V) embedding table once to a lane-dense (Vpad, Vpad) f32 array."""
    v = table.shape[0]
    v_pad = _round_up(v, _LANES)
    return jnp.pad(table.astype(jnp.float32), ((0, v_pad - v), (0, v_pad - v)))


def _choose_tiling(n, tile_n):
    """Row-tile size: multiple of 8, large by default, capped so grid >= 2 steps."""
    tile_n = max(_SUBLANES, _round_up(min(tile_n, n), _SUBLANES))
    if n > _SUBLANES:
        # v7x: ensure at least 2 grid steps so both TensorCores get sharded work.
        tile_n = min(tile_n, _round_up(pl.cdiv(n, 2), _SUBLANES))
    num_tiles = pl.cdiv(n, tile_n)
    return tile_n, num_tiles, num_tiles * tile_n


# ---------------------------------------------------------------------------
# Kernels
# ---------------------------------------------------------------------------

def _bigram_logits_kernel(idx_ref, table_ref, logits_ref):
    """Inference path: logits[i] = table[idx[i]] via a one-hot MXU gather."""
    tile_n, v_pad = logits_ref.shape
    col = jax.lax.broadcasted_iota(jnp.int32, (tile_n, v_pad), 1)
    one_hot = (col == idx_ref[...]).astype(jnp.float32)            # exact gather
    logits_ref[...] = jnp.dot(one_hot, table_ref[...],
                              preferred_element_type=jnp.float32)


def _nll_tile(tok, table, *, vocab, n_valid):
    """Shared tile body: one-hot gather + numerically stable per-token NLL."""
    tile_n = tok.shape[0]
    v_pad = table.shape[1]
    idx = tok[:, 0:1]                                               # (tile_n, 1)
    tgt = tok[:, 1:2]                                               # (tile_n, 1)
    col = jax.lax.broadcasted_iota(jnp.int32, (tile_n, v_pad), 1)   # (tile_n, Vpad)

    one_hot = (col == idx).astype(jnp.float32)
    logits = jnp.dot(one_hot, table, preferred_element_type=jnp.float32)

    if vocab == v_pad:                       # lane-aligned vocab: no column mask
        masked = logits
    else:
        masked = jnp.where(col < vocab, logits, jnp.float32(-1e30))
    row_max = jnp.max(masked, axis=-1, keepdims=True)
    shifted = masked - row_max
    lse = jnp.log(jnp.sum(jnp.exp(shifted), axis=-1, keepdims=True))
    # Target logit (shifted) without a one-hot target matrix; row_max cancels.
    tgt_shifted = jnp.sum(jnp.where(col == tgt, shifted, 0.0),
                          axis=-1, keepdims=True)
    nll = lse - tgt_shifted                                         # (tile_n, 1)

    if n_valid is not None:                  # mask padded tail rows in-kernel
        row = jax.lax.broadcasted_iota(jnp.int32, (tile_n, 1), 0)
        global_row = pl.program_id(0) * tile_n + row
        nll = jnp.where(global_row < n_valid, nll, 0.0)
    return logits, nll


def _bigram_train_kernel(tok_ref, table_ref, logits_ref, nll_ref, *, vocab, n_valid):
    logits, nll = _nll_tile(tok_ref[...], table_ref[...],
                            vocab=vocab, n_valid=n_valid)
    logits_ref[...] = logits
    # Per-tile partial sum: one tiny store instead of tile_n/8 masked column stores.
    nll_ref[...] = jnp.sum(nll, axis=0, keepdims=True).reshape(1, 1, 1)


def _bigram_loss_only_kernel(tok_ref, table_ref, nll_ref, *, vocab, n_valid):
    _, nll = _nll_tile(tok_ref[...], table_ref[...], vocab=vocab, n_valid=n_valid)
    nll_ref[...] = jnp.sum(nll, axis=0, keepdims=True).reshape(1, 1, 1)


# ---------------------------------------------------------------------------
# Table BlockSpec: single-buffered constant block, with a safe fallback
# ---------------------------------------------------------------------------

_SINGLE_BUFFER_TABLE_OK = None  # tri-state cache (None = not probed yet)


def _table_spec(v_pad, single_buffer):
    if single_buffer:
        # Constant index_map -> never re-fetched; one VMEM buffer is enough.
        return pl.BlockSpec((v_pad, v_pad), lambda i: (0, 0),
                            pipeline_mode=pl.Buffered(1))
    return pl.BlockSpec((v_pad, v_pad), lambda i: (0, 0))


def _call_with_table_spec(call, v_pad):
    """Prefer a single-buffered table block; fall back if unsupported."""
    global _SINGLE_BUFFER_TABLE_OK
    if _SINGLE_BUFFER_TABLE_OK is None:
        try:
            out = call(_table_spec(v_pad, True))
            _SINGLE_BUFFER_TABLE_OK = True
            return out
        except Exception:
            _SINGLE_BUFFER_TABLE_OK = False
    if _SINGLE_BUFFER_TABLE_OK:
        return call(_table_spec(v_pad, True))
    return call(_table_spec(v_pad, False))


# ---------------------------------------------------------------------------
# Forward wrapper
# ---------------------------------------------------------------------------

def bigram_forward_padded(idx, table_padded, vocab, targets=None, *,
                          tile_n=1024, return_logits=True,
                          out_dtype=jnp.float32):
    """Pallas equivalent of BigramLanguageModel.forward (table pre-padded)."""
    B, T = idx.shape
    V = vocab
    v_pad = table_padded.shape[0]
    N = B * T
    tile_n, num_tiles, n_pad = _choose_tiling(N, tile_n)

    compiler_params = pltpu.CompilerParams(
        dimension_semantics=("parallel",),     # no cross-tile carry
        vmem_limit_bytes=32 * 1024 * 1024,
    )
    matmul_flops = 2 * n_pad * v_pad * v_pad
    table_bytes = v_pad * v_pad * 4

    if targets is None:
        idx_flat = jnp.pad(idx.reshape(N, 1).astype(jnp.int32),
                           ((0, n_pad - N), (0, 0)))

        def call(table_spec):
            return pl.pallas_call(
                _bigram_logits_kernel,
                out_shape=jax.ShapeDtypeStruct((n_pad, v_pad), jnp.float32),
                grid=(num_tiles,),
                in_specs=[pl.BlockSpec((tile_n, 1), lambda i: (i, 0)), table_spec],
                out_specs=pl.BlockSpec((tile_n, v_pad), lambda i: (i, 0)),
                compiler_params=compiler_params,
                cost_estimate=pl.CostEstimate(
                    flops=matmul_flops, transcendentals=0,
                    bytes_accessed=n_pad * 4 + table_bytes + n_pad * v_pad * 4),
            )(idx_flat, table_padded)

        logits_p = _call_with_table_spec(call, v_pad)
        # PyTorch returns (B, T, C) logits and loss=None in this branch.
        return logits_p[:N, :V].astype(out_dtype).reshape(B, T, V), None

    # Training path: pack idx & targets into one (n_pad, 2) int32 array.
    tok_flat = jnp.concatenate([idx.reshape(N, 1), targets.reshape(N, 1)],
                               axis=1).astype(jnp.int32)
    tok_flat = jnp.pad(tok_flat, ((0, n_pad - N), (0, 0)))
    n_valid = None if n_pad == N else N
    trans = n_pad * (v_pad + 1)                # exp + log per row

    if return_logits:
        kernel = functools.partial(_bigram_train_kernel, vocab=V, n_valid=n_valid)

        def call(table_spec):
            return pl.pallas_call(
                kernel,
                out_shape=(jax.ShapeDtypeStruct((n_pad, v_pad), jnp.float32),
                           jax.ShapeDtypeStruct((num_tiles, 1, 1), jnp.float32)),
                grid=(num_tiles,),
                in_specs=[pl.BlockSpec((tile_n, 2), lambda i: (i, 0)), table_spec],
                out_specs=(pl.BlockSpec((tile_n, v_pad), lambda i: (i, 0)),
                           pl.BlockSpec((1, 1, 1), lambda i: (i, 0, 0))),
                compiler_params=compiler_params,
                cost_estimate=pl.CostEstimate(
                    flops=matmul_flops, transcendentals=trans,
                    bytes_accessed=(n_pad * 2 * 4 + table_bytes
                                    + n_pad * v_pad * 4 + num_tiles * 4)),
            )(tok_flat, table_padded)

        logits_p, nll_part = _call_with_table_spec(call, v_pad)
        loss = jnp.sum(nll_part) / N
        # PyTorch returns the flattened (B*T, C) logits and a scalar loss.
        return logits_p[:N, :V].astype(out_dtype), loss

    # Loss-only path: never writes the (N, Vpad) logits back to HBM.
    kernel = functools.partial(_bigram_loss_only_kernel, vocab=V, n_valid=n_valid)

    def call(table_spec):
        return pl.pallas_call(
            kernel,
            out_shape=jax.ShapeDtypeStruct((num_tiles, 1, 1), jnp.float32),
            grid=(num_tiles,),
            in_specs=[pl.BlockSpec((tile_n, 2), lambda i: (i, 0)), table_spec],
            out_specs=pl.BlockSpec((1, 1, 1), lambda i: (i, 0, 0)),
            compiler_params=compiler_params,
            cost_estimate=pl.CostEstimate(
                flops=matmul_flops, transcendentals=trans,
                bytes_accessed=n_pad * 2 * 4 + table_bytes + num_tiles * 4),
        )(tok_flat, table_padded)

    nll_part = _call_with_table_spec(call, v_pad)
    return None, jnp.sum(nll_part) / N


class BigramLanguageModel:
    """Pallas/JAX port of the PyTorch BigramLanguageModel forward pass."""

    def __init__(self, token_embedding_table):
        self.vocab_size = int(token_embedding_table.shape[0])
        self.dtype = token_embedding_table.dtype
        # Pad once at init: avoids re-padding + an HBM round trip of the V^2
        # table on every forward call.
        self.table_padded = pad_table(token_embedding_table)

    def forward(self, idx, targets=None, *, tile_n=1024, return_logits=True):
        return bigram_forward_padded(idx, self.table_padded, self.vocab_size,
                                     targets, tile_n=tile_n,
                                     return_logits=return_logits,
                                     out_dtype=self.dtype)

    __call__ = forward

    def loss_only(self, idx, targets, *, tile_n=1024):
        return self.forward(idx, targets, tile_n=tile_n, return_logits=False)[1]

    # TODO(synk): generate() (torch.multinomial sampling loop) is host-side
    # control flow outside the forward-pass spec; not implemented here.


# ---------------------------------------------------------------------------
# Self-test
# ---------------------------------------------------------------------------

def _reference(table, idx, targets):
    ref_logits = table[idx.reshape(-1)]
    ref_lse = jax.nn.logsumexp(ref_logits.astype(jnp.float32), axis=-1)
    ref_tgt = jnp.take_along_axis(ref_logits.astype(jnp.float32),
                                  targets.reshape(-1, 1), axis=-1)[:, 0]
    return ref_logits, jnp.mean(ref_lse - ref_tgt)


if __name__ == "__main__":
    key = jax.random.PRNGKey(0)

    # --- Test 1: char-level vocab (65), B*T multiple of the tile --------------
    vocab_size = 65
    B, T = 2, 8
    k_table, k_idx, k_tgt, key = jax.random.split(key, 4)
    table = jax.random.normal(k_table, (vocab_size, vocab_size), dtype=jnp.float32)
    idx = jax.random.randint(k_idx, (B, T), 0, vocab_size, dtype=jnp.int32)
    targets = jax.random.randint(k_tgt, (B, T), 0, vocab_size, dtype=jnp.int32)

    model = BigramLanguageModel(table)

    logits, loss = model.forward(idx, targets)
    jax.block_until_ready((logits, loss))
    ref_logits, ref_loss = _reference(table, idx, targets)
    assert logits.shape == (B * T, vocab_size)
    assert jnp.allclose(logits, ref_logits, atol=1e-5), "logits mismatch"
    assert jnp.allclose(loss, ref_loss, atol=1e-5), "loss mismatch"

    # Inference branch: (B, T, C) logits, loss=None, no CE work done.
    logits3d, no_loss = model.forward(idx, None)
    jax.block_until_ready(logits3d)
    assert logits3d.shape == (B, T, vocab_size) and no_loss is None
    assert jnp.allclose(logits3d.reshape(B * T, vocab_size), ref_logits, atol=1e-5)

    # Loss-only branch (no logits writeback).
    loss_lo = model.loss_only(idx, targets)
    jax.block_until_ready(loss_lo)
    assert jnp.allclose(loss_lo, ref_loss, atol=1e-5), "loss-only mismatch"

    # --- Test 2: lane-aligned vocab (128) + ragged N (tail-row masking) -------
    vocab_size2 = 128
    B2, T2 = 3, 5                                # N=15 -> padded tail rows
    k_table2, k_idx2, k_tgt2, key = jax.random.split(key, 4)
    table2 = jax.random.normal(k_table2, (vocab_size2, vocab_size2),
                               dtype=jnp.float32)
    idx2 = jax.random.randint(k_idx2, (B2, T2), 0, vocab_size2, dtype=jnp.int32)
    targets2 = jax.random.randint(k_tgt2, (B2, T2), 0, vocab_size2, dtype=jnp.int32)

    model2 = BigramLanguageModel(table2)
    logits2, loss2 = model2.forward(idx2, targets2)
    jax.block_until_ready((logits2, loss2))
    ref_logits2, ref_loss2 = _reference(table2, idx2, targets2)
    assert logits2.shape == (B2 * T2, vocab_size2)
    assert jnp.allclose(logits2, ref_logits2, atol=1e-5), "logits mismatch (V=128)"
    assert jnp.allclose(loss2, ref_loss2, atol=1e-5), "loss mismatch (V=128)"

    print("KERNEL_OK")
</pallas_src>

<mosaic_0001>
module attributes {stable_mosaic.version = 11 : i64} {
  func.func @_bigram_train_kernel(%arg0: i32, %arg1: memref<8x2xi32, #tpu.memory_space<vmem>>, %arg2: memref<128x128xf32, #tpu.memory_space<vmem>>, %arg3: memref<8x128xf32, #tpu.memory_space<vmem>>, %arg4: memref<1x1x1xf32, #tpu.memory_space<vmem>>) attributes {dimension_semantics = [#tpu.dimension_semantics<parallel>], iteration_bounds = array<i64: 2>, scalar_prefetch = 0 : i64, scratch_operands = 0 : i64, tpu.core_type = #tpu.core_type<tc>, window_params = [{transform_indices = @transform_0, window_bounds = array<i64: 8, 2>}, {pipeline_mode = #tpu.pipeline_mode<synchronous>, transform_indices = @transform_1, window_bounds = array<i64: 128, 128>}, {transform_indices = @transform_2, window_bounds = array<i64: 8, 128>}, {transform_indices = @transform_3, window_bounds = array<i64: 1, 1, 1>}]} {
    %c0 = arith.constant 0 : index
    %c0_0 = arith.constant 0 : index
    %0 = vector.load %arg1[%c0, %c0_0] : memref<8x2xi32, #tpu.memory_space<vmem>>, vector<8x2xi32>
    %c0_1 = arith.constant 0 : index
    %c0_2 = arith.constant 0 : index
    %1 = vector.load %arg2[%c0_1, %c0_2] : memref<128x128xf32, #tpu.memory_space<vmem>>, vector<128x128xf32>
    %2 = vector.extract_strided_slice %0 {offsets = [0, 0], sizes = [8, 1], strides = [1, 1]} : vector<8x2xi32> to vector<8x1xi32>
    %3 = vector.extract_strided_slice %0 {offsets = [0, 1], sizes = [8, 1], strides = [1, 1]} : vector<8x2xi32> to vector<8x1xi32>
    %4 = tpu.iota {dimensions = array<i32: 1>} : vector<8x128xi32>
    %5 = vector.broadcast %2 : vector<8x1xi32> to vector<8x128xi32>
    %6 = arith.cmpi eq, %4, %5 : vector<8x128xi32>
    %7 = arith.extui %6 : vector<8x128xi1> to vector<8x128xi32>
    %8 = arith.sitofp %7 : vector<8x128xi32> to vector<8x128xf32>
    %cst = arith.constant dense<0.000000e+00> : vector<8x128xf32>
    %9 = tpu.matmul %8, %1, %cst {dimension_numbers = #tpu.dot_dimension_numbers<[1], [0], [0], [1], [0, 0, 1, 1], [], []>} : vector<8x128xf32>, vector<128x128xf32>, vector<8x128xf32> -> vector<8x128xf32>
    %c65_i32 = arith.constant 65 : i32
    %10 = vector.broadcast %c65_i32 : i32 to vector<8x128xi32>
    %11 = arith.cmpi slt, %4, %10 : vector<8x128xi32>
    %cst_3 = arith.constant -1.000000e+30 : f32
    %12 = vector.broadcast %cst_3 : f32 to vector<8x128xf32>
    %13 = arith.select %11, %9, %12 : vector<8x128xi1>, vector<8x128xf32>
    %cst_4 = arith.constant dense<0xFF800000> : vector<8xf32>
    %14 = vector.multi_reduction <maximumf>, %13, %cst_4 [1] : vector<8x128xf32> to vector<8xf32>
    %15 = vector.shape_cast %14 : vector<8xf32> to vector<8x1xf32>
    %16 = vector.broadcast %15 : vector<8x1xf32> to vector<8x128xf32>
    %17 = arith.subf %13, %16 : vector<8x128xf32>
    %18 = math.exp %17 : vector<8x128xf32>
    %cst_5 = arith.constant dense<0.000000e+00> : vector<8xf32>
    %19 = vector.multi_reduction <add>, %18, %cst_5 [1] : vector<8x128xf32> to vector<8xf32>
    %20 = vector.shape_cast %19 : vector<8xf32> to vector<8x1xf32>
    %21 = math.log %20 : vector<8x1xf32>
    %22 = vector.broadcast %3 : vector<8x1xi32> to vector<8x128xi32>
    %23 = arith.cmpi eq, %4, %22 : vector<8x128xi32>
    %cst_6 = arith.constant 0.000000e+00 : f32
    %24 = vector.broadcast %cst_6 : f32 to vector<8x128xf32>
    %25 = arith.select %23, %17, %24 : vector<8x128xi1>, vector<8x128xf32>
    %cst_7 = arith.constant dense<0.000000e+00> : vector<8xf32>
    %26 = vector.multi_reduction <add>, %25, %cst_7 [1] : vector<8x128xf32> to vector<8xf32>
    %27 = vector.shape_cast %26 : vector<8xf32> to vector<8x1xf32>
    %28 = arith.subf %21, %27 : vector<8x1xf32>
    %c0_8 = arith.constant 0 : index
    %c0_9 = arith.constant 0 : index
    %29 = vector.load %arg3[%c0_8, %c0_9] : memref<8x128xf32, #tpu.memory_space<vmem>>, vector<8x128xf32>
    tpu.vector_store %arg3[%c0_8, %c0_9], %9 {strides = array<i32>} : memref<8x128xf32, #tpu.memory_space<vmem>>, vector<8x128xf32>,
    %cst_10 = arith.constant dense<0.000000e+00> : vector<1xf32>
    %30 = vector.multi_reduction <add>, %28, %cst_10 [0] : vector<8x1xf32> to vector<1xf32>
    %31 = vector.shape_cast %30 : vector<1xf32> to vector<1x1xf32>
    %32 = vector.shape_cast %31 : vector<1x1xf32> to vector<1x1x1xf32>
    %c0_11 = arith.constant 0 : index
    %c0_12 = arith.constant 0 : index
    %c0_13 = arith.constant 0 : index
    %33 = vector.load %arg4[%c0_11, %c0_12, %c0_13] : memref<1x1x1xf32, #tpu.memory_space<vmem>>, vector<1x1x1xf32>
    tpu.vector_store %arg4[%c0_11, %c0_12, %c0_13], %32 {strides = array<i32>} : memref<1x1x1xf32, #tpu.memory_space<vmem>>, vector<1x1x1xf32>,
    return
  }
  func.func @transform_0(%arg0: i32) -> (i32, i32) {
    %c0_i32 = arith.constant 0 : i32
    %c0_i32_0 = arith.constant 0 : i32
    return %arg0, %c0_i32 : i32, i32
  }
  func.func @transform_1(%arg0: i32) -> (i32, i32) {
    %c0_i32 = arith.constant 0 : i32
    %c0_i32_0 = arith.constant 0 : i32
    %c0_i32_1 = arith.constant 0 : i32
    return %c0_i32, %c0_i32_0 : i32, i32
  }
  func.func @transform_2(%arg0: i32) -> (i32, i32) {
    %c0_i32 = arith.constant 0 : i32
    %c0_i32_0 = arith.constant 0 : i32
    return %arg0, %c0_i32 : i32, i32
  }
  func.func @transform_3(%arg0: i32) -> (i32, i32, i32) {
    %c0_i32 = arith.constant 0 : i32
    %c0_i32_0 = arith.constant 0 : i32
    %c0_i32_1 = arith.constant 0 : i32
    return %arg0, %c0_i32, %c0_i32_0 : i32, i32, i32
  }
}

module attributes {stable_mosaic.version = 11 : i64} {
  func.func @_bigram_train_kernel(%arg0: i32, %arg1: memref<8x2xi32, #tpu.memory_space<vmem>>, %arg2: memref<128x128xf32, #tpu.memory_space<vmem>>, %arg3: memref<8x128xf32, #tpu.memory_space<vmem>>, %arg4: memref<1x1x1xf32, #tpu.memory_space<vmem>>) attributes {dimension_semantics = [#tpu.dimension_semantics<parallel>], iteration_bounds = array<i64: 2>, scalar_prefetch = 0 : i64, scratch_operands = 0 : i64, tpu.core_type = #tpu.core_type<tc>, window_params = [{transform_indices = @transform_0, window_bounds = array<i64: 8, 2>}, {pipeline_mode = #tpu.pipeline_mode<synchronous>, transform_indices = @transform_1, window_bounds = array<i64: 128, 128>}, {transform_indices = @transform_2, window_bounds = array<i64: 8, 128>}, {transform_indices = @transform_3, window_bounds = array<i64: 1, 1, 1>}]} {
    %c0 = arith.constant 0 : index
    %c0_0 = arith.constant 0 : index
    %0 = vector.load %arg1[%c0, %c0_0] : memref<8x2xi32, #tpu.memory_space<vmem>>, vector<8x2xi32>
    %c0_1 = arith.constant 0 : index
    %c0_2 = arith.constant 0 : index
    %1 = vector.load %arg2[%c0_1, %c0_2] : memref<128x128xf32, #tpu.memory_space<vmem>>, vector<128x128xf32>
    %2 = vector.extract_strided_slice %0 {offsets = [0, 0], sizes = [8, 1], strides = [1, 1]} : vector<8x2xi32> to vector<8x1xi32>
    %3 = vector.extract_strided_slice %0 {offsets = [0, 1], sizes = [8, 1], strides = [1, 1]} : vector<8x2xi32> to vector<8x1xi32>
    %4 = tpu.iota {dimensions = array<i32: 1>} : vector<8x128xi32>
    %5 = vector.broadcast %2 : vector<8x1xi32> to vector<8x128xi32>
    %6 = arith.cmpi eq, %4, %5 : vector<8x128xi32>
    %7 = arith.extui %6 : vector<8x128xi1> to vector<8x128xi32>
    %8 = arith.sitofp %7 : vector<8x128xi32> to vector<8x128xf32>
    %cst = arith.constant dense<0.000000e+00> : vector<8x128xf32>
    %9 = tpu.matmul %8, %1, %cst {dimension_numbers = #tpu.dot_dimension_numbers<[1], [0], [0], [1], [0, 0, 1, 1], [], []>} : vector<8x128xf32>, vector<128x128xf32>, vector<8x128xf32> -> vector<8x128xf32>
    %c65_i32 = arith.constant 65 : i32
    %10 = vector.broadcast %c65_i32 : i32 to vector<8x128xi32>
    %11 = arith.cmpi slt, %4, %10 : vector<8x128xi32>
    %cst_3 = arith.constant -1.000000e+30 : f32
    %12 = vector.broadcast %cst_3 : f32 to vector<8x128xf32>
    %13 = arith.select %11, %9, %12 : vector<8x128xi1>, vector<8x128xf32>
    %cst_4 = arith.constant dense<0xFF800000> : vector<8xf32>
    %14 = vector.multi_reduction <maximumf>, %13, %cst_4 [1] : vector<8x128xf32> to vector<8xf32>
    %15 = vector.shape_cast %14 : vector<8xf32> to vector<8x1xf32>
    %16 = vector.broadcast %15 : vector<8x1xf32> to vector<8x128xf32>
    %17 = arith.subf %13, %16 : vector<8x128xf32>
    %18 = math.exp %17 : vector<8x128xf32>
    %cst_5 = arith.constant dense<0.000000e+00> : vector<8xf32>
    %19 = vector.multi_reduction <add>, %18, %cst_5 [1] : vector<8x128xf32> to vector<8xf32>
    %20 = vector.shape_cast %19 : vector<8xf32> to vector<8x1xf32>
    %21 = math.log %20 : vector<8x1xf32>
    %22 = vector.broadcast %3 : vector<8x1xi32> to vector<8x128xi32>
    %23 = arith.cmpi eq, %4, %22 : vector<8x128xi32>
    %cst_6 = arith.constant 0.000000e+00 : f32
    %24 = vector.broadcast %cst_6 : f32 to vector<8x128xf32>
    %25 = arith.select %23, %17, %24 : vector<8x128xi1>, vector<8x128xf32>
    %cst_7 = arith.constant dense<0.000000e+00> : vector<8xf32>
    %26 = vector.multi_reduction <add>, %25, %cst_7 [1] : vector<8x128xf32> to vector<8xf32>
    %27 = vector.shape_cast %26 : vector<8xf32> to vector<8x1xf32>
    %28 = arith.subf %21, %27 : vector<8x1xf32>
    %c0_8 = arith.constant 0 : index
    %c0_9 = arith.constant 0 : index
    %29 = vector.load %arg3[%c0_8, %c0_9] : memref<8x128xf32, #tpu.memory_space<vmem>>, vector<8x128xf32>
    tpu.vector_store %arg3[%c0_8, %c0_9], %9 {strides = array<i32>} : memref<8x128xf32, #tpu.memory_space<vmem>>, vector<8x128xf32>,
    %cst_10 = arith.constant dense<0.000000e+00> : vector<1xf32>
    %30 = vector.multi_reduction <add>, %28, %cst_10 [0] : vector<8x1xf32> to vector<1xf32>
    %31 = vector.shape_cast %30 : vector<1xf32> to vector<1x1xf32>
    %32 = vector.shape_cast %31 : vector<1x1xf32> to vector<1x1x1xf32>
    %c0_11 = arith.constant 0 : index
    %c0_12 = arith.constant 0 : index
    %c0_13 = arith.constant 0 : index
    %33 = vector.load %arg4[%c0_11, %c0_12, %c0_13] : memref<1x1x1xf32, #tpu.memory_space<vmem>>, vector<1x1x1xf32>
    tpu.vector_store %arg4[%c0_11, %c0_12, %c0_13], %32 {strides = array<i32>} : memref<1x1x1xf32, #tpu.memory_space<vmem>>, vector<1x1x1xf32>,
    return
  }
  func.func @transform_0(%arg0: i32) -> (i32, i32) {
    %c0_i32 = arith.constant 0 : i32
    %c0_i32_0 = arith.constant 0 : i32
    return %arg0, %c0_i32 : i32, i32
  }
  func.func @transform_1(%arg0: i32) -> (i32, i32) {
    %c0_i32 = arith.constant 0 : i32
    %c0_i32_0 = arith.constant 0 : i32
    %c0_i32_1 = arith.constant 0 : i32
    return %c0_i32, %c0_i32_0 : i32, i32
  }
  func.func @transform_2(%arg0: i32) -> (i32, i32) {
    %c0_i32 = arith.constant 0 : i32
    %c0_i32_0 = arith.constant 0 : i32
    return %arg0, %c0_i32 : i32, i32
  }
  func.func @transform_3(%arg0: i32) -> (i32, i32, i32) {
    %c0_i32 = arith.constant 0 : i32
    %c0_i32_0 = arith.constant 0 : i32
    %c0_i32_1 = arith.constant 0 : i32
    return %arg0, %c0_i32, %c0_i32_0 : i32, i32, i32
  }
}

</mosaic_0001>

<llo_original>
// kernel: tpu_custom_call.1
$region0: #{tpu_custom_call.1}
  #allocation0 [shape = 'u32[]', space=smem, size = 0x4, offset = 0x4, fixed_abs, tag = 'smem constant byte address 0x4 - core index']
  #allocation1 [shape = 'u32[144,128]{1,0:T(1,128)}', space=vmem, size = 0x12000, scoped, tag = 'internal scratch']
  %s0 = inlined_call_operand.vmem [shape: s32[16,2], index: 0, kind: input, shape index: {}]
  %s1 = inlined_call_operand.hbm [shape: f32[128,128], index: 1, kind: input, shape index: {}]
  %s2 = inlined_call_operand.hbm [shape: f32[16,128], index: 2, kind: output, shape index: {0}]
  %s3 = inlined_call_operand.vmem [shape: f32[2,1,1], index: 3, kind: output, shape index: {1}]
  %4 = xla_tuple %s2, %s3
  %s5 = sld [smem:[#allocation0]]
  $region53: #{tpu_custom_call.1} parent=0
    _
  %s7 = ssub.s32 1, %s5
  %s8 = scalar_select 0, %s7, %s5
  $region1: #{tpu_custom_call.1} parent=0
    #allocation2 [shape = 'u8[65536]{0}', space=vmem, size = 0x10000, scoped, tag = 'input window, operand 1, single buffered']
    #allocation3 [shape = 's32[2]{0}', space=sflag, size = 0x8, scoped, tag = 'scoped memory for tpu_custom_call.1']
    #allocation4 [shape = 's32[2]{0}', space=sflag, size = 0x8, scoped, tag = 'scoped memory for tpu_custom_call.1']
    #allocation5 [shape = 'u8[8192]{0}', space=vmem, size = 0x2000, scoped, tag = 'output window, operand 0']
    %9 = vsyncpa [#allocation3], 0
    %10 = vsyncpa [#allocation4], 0
    %s11 = scalar_lea.sflag [#allocation4], 1
    %12 = vsyncpa %s11, 0
    loop: start=0, step=1, limit=4
    $region2: #{tpu_custom_call.1} parent=1 // loop_pre_header
      _
    $region3: #{tpu_custom_call.1} parent=1 // loop_header
      %s14 = sphi 0, %s18
      %p15 = scmp.ge.s32.totalorder %s14, 4
      %s24 = sphi 0, %s26
      %s27 = sphi 0, %s24
      %s28 = sphi 0, %s27
      %s44 = sphi 0, %s28
      %s48 = sphi 0, %s48
      %s50 = sphi 0, %s48
      %s51 = sphi 0, %s50
      %s65 = sphi 0, %s51
      %s71 = sphi 0, %s73
      %s74 = sphi 0, %s71
      %s75 = sphi 0, %s74
      %s91 = sphi 0, %s75
      %s97 = sphi 0, %s99
      %s100 = sphi 0, %s97
      %s101 = sphi 0, %s100
      %s117 = sphi 0, %s101
    $region4: #{tpu_custom_call.1} parent=1 // loop_header_branch
      %17 = sbr.rel (%p15) target = $region8
    $region5: #{tpu_custom_call.1} parent=1 // loop_body
      %s19 = ssub.s32 %s14, 1
      %s20 = ssub.s32 %s14, 2
      %s21 = sadd.s32 %s14, 1
      %s22 = ssub.s32 %s14, %s21
      %p23 = scmp.eq.s32.totalorder %s22, 0
      %s25 = sadd.s32 %s24, 1
      %s26 = scalar_select %p23, %s24, %s25
      %p29 = pneg %p23
      %p30 = scmp.eq.s32.totalorder %s14, 1
      %p31 = por %p29, %p30
      %p32 = scmp.ne.s32.totalorder %s24, %s27
      %p33 = scmp.eq.s32.totalorder %s14, 0
      %p34 = por %p32, %p33
      %p35 = scmp.ne.s32.totalorder %s24, %s27
      %p36 = scmp.eq.s32.totalorder %s19, 1
      %p37 = por %p35, %p36
      %p38 = scmp.ne.s32.totalorder %s27, %s28
      %p39 = scmp.eq.s32.totalorder %s19, 0
      %p40 = por %p38, %p39
      %p41 = scmp.ne.s32.totalorder %s27, %s28
      %p42 = scmp.eq.s32.totalorder %s20, 1
      %p43 = por %p41, %p42
      %p45 = scmp.ne.s32.totalorder %s28, %s44
      %p46 = scmp.eq.s32.totalorder %s20, 0
      %p47 = por %p45, %p46
      %s49 = sadd.s32 %s48, 1
      %p52 = scmp.eq.s32.totalorder %s14, 1
      %p53 = scmp.ne.s32.totalorder %s48, %s50
      %p54 = scmp.eq.s32.totalorder %s14, 0
      %p55 = por %p53, %p54
      %p56 = scmp.ne.s32.totalorder %s48, %s50
      %p57 = scmp.eq.s32.totalorder %s19, 1
      %p58 = por %p56, %p57
      %p59 = scmp.ne.s32.totalorder %s50, %s51
      %p60 = scmp.eq.s32.totalorder %s19, 0
      %p61 = por %p59, %p60
      %p62 = scmp.ne.s32.totalorder %s50, %s51
      %p63 = scmp.eq.s32.totalorder %s20, 1
      %p64 = por %p62, %p63
      %p66 = scmp.ne.s32.totalorder %s51, %s65
      %p67 = scmp.eq.s32.totalorder %s20, 0
      %p68 = por %p66, %p67
      %s69 = ssub.s32 %s14, %s21
      %p70 = scmp.eq.s32.totalorder %s69, 0
      %s72 = sadd.s32 %s71, 1
      %s73 = scalar_select %p70, %s71, %s72
      %p76 = pneg %p70
      %p77 = scmp.eq.s32.totalorder %s14, 1
      %p78 = por %p76, %p77
      %p79 = scmp.ne.s32.totalorder %s71, %s74
      %p80 = scmp.eq.s32.totalorder %s14, 0
      %p81 = por %p79, %p80
      %p82 = scmp.ne.s32.totalorder %s71, %s74
      %p83 = scmp.eq.s32.totalorder %s19, 1
      %p84 = por %p82, %p83
      %p85 = scmp.ne.s32.totalorder %s74, %s75
      %p86 = scmp.eq.s32.totalorder %s19, 0
      %p87 = por %p85, %p86
      %p88 = scmp.ne.s32.totalorder %s74, %s75
      %p89 = scmp.eq.s32.totalorder %s20, 1
      %p90 = por %p88, %p89
      %p92 = scmp.ne.s32.totalorder %s75, %s91
      %p93 = scmp.eq.s32.totalorder %s20, 0
      %p94 = por %p92, %p93
      %s95 = ssub.s32 %s14, %s21
      %p96 = scmp.eq.s32.totalorder %s95, 0
      %s98 = sadd.s32 %s97, 1
      %s99 = scalar_select %p96, %s97, %s98
      %p102 = pneg %p96
      %p103 = scmp.eq.s32.totalorder %s14, 1
      %p104 = por %p102, %p103
      %p105 = scmp.ne.s32.totalorder %s97, %s100
      %p106 = scmp.eq.s32.totalorder %s14, 0
      %p107 = por %p105, %p106
      %p108 = scmp.ne.s32.totalorder %s97, %s100
      %p109 = scmp.eq.s32.totalorder %s19, 1
      %p110 = por %p108, %p109
      %p111 = scmp.ne.s32.totalorder %s100, %s101
      %p112 = scmp.eq.s32.totalorder %s19, 0
      %p113 = por %p111, %p112
      %p114 = scmp.ne.s32.totalorder %s100, %s101
      %p115 = scmp.eq.s32.totalorder %s20, 1
      %p116 = por %p114, %p115
      %p118 = scmp.ne.s32.totalorder %s101, %s117
      %p119 = scmp.eq.s32.totalorder %s20, 0
      %p120 = por %p118, %p119
      %p121 = scmp.le.s32.totalorder 1, %s14
      %p122 = scmp.lt.s32.totalorder %s14, 3
      %p123 = pnand %p121, %p122
      %p124 = pneg %p123
      // Predicated region
      $region9: #{tpu_custom_call.1} parent=5 // pred_check
        _
      $region10: #{tpu_custom_call.1} parent=5 // pred_check_branch
        %126 = sbr.rel (%p123) target = $region12
      $region11: #{tpu_custom_call.1} parent=5 // pred_region
        %s127 = ssub.s32 %s14, 1
        // Predicated region
        $region13: #{tpu_custom_call.1} parent=11 // pred_check
          %p128 = pneg %p61
        $region14: #{tpu_custom_call.1} parent=11 // pred_check_branch
          %130 = sbr.rel (%p128) target = $region16
        $region15: #{tpu_custom_call.1} parent=11 // pred_region
          %s132 = ssub.s32 2048, 2048
          %133 = vsyncadd [#allocation3], %s132
          %s134 = sshll.u32 [#allocation2], 4
          %s135 = int_to_ptr.vmem [resolvable:$true] %s134
          %140 = dma.hbm_to_vmem [thread:$0]  %s1, 2048, %s135, [#allocation3], 128, 128, 8
        $region16: #{tpu_custom_call.1} parent=11 // pred_fallthru
          _
      $region12: #{tpu_custom_call.1} parent=5 // pred_fallthru
        _
      %p141 = scmp.lt.s32.totalorder %s14, 2
      // Predicated region
      $region17: #{tpu_custom_call.1} parent=5 // pred_check
        %p142 = pneg %p141
      $region18: #{tpu_custom_call.1} parent=5 // pred_check_branch
        %144 = sbr.rel (%p142) target = $region20
      $region19: #{tpu_custom_call.1} parent=5 // pred_region
        // Predicated region
        $region21: #{tpu_custom_call.1} parent=19 // pred_check
          %p145 = pneg %p34
        $region22: #{tpu_custom_call.1} parent=19 // pred_check_branch
          %147 = sbr.rel (%p145) target = $region24
        $region23: #{tpu_custom_call.1} parent=19 // pred_region
          %p148 = scmp.lt.s32.totalorder %s14, 1
          %s149 = scalar_select %p148, %s14, 1
          %s150 = smul.addr %s149, 8
          %s151 = scalar_lea.vmem %s0, %s150
        $region24: #{tpu_custom_call.1} parent=19 // pred_fallthru
          _
      $region20: #{tpu_custom_call.1} parent=5 // pred_fallthru
        _
      %p152 = scmp.le.s32.totalorder 1, %s14
      %p153 = scmp.lt.s32.totalorder %s14, 3
      %p154 = pnand %p152, %p153
      %p155 = pneg %p154
      // Predicated region
      $region25: #{tpu_custom_call.1} parent=5 // pred_check
        _
      $region26: #{tpu_custom_call.1} parent=5 // pred_check_branch
        %157 = sbr.rel (%p154) target = $region28
      $region27: #{tpu_custom_call.1} parent=5 // pred_region
        %s158 = ssub.s32 %s14, 1
        // Predicated region
        $region29: #{tpu_custom_call.1} parent=27 // pred_check
          %p159 = pneg %p61
        $region30: #{tpu_custom_call.1} parent=27 // pred_check_branch
          %161 = sbr.rel (%p159) target = $region32
        $region31: #{tpu_custom_call.1} parent=27 // pred_region
          %162 = dma.done [#allocation3], 2048
        $region32: #{tpu_custom_call.1} parent=27 // pred_fallthru
          _
        %p163 = scmp.lt.s32.totalorder %s19, 1
        %s164 = scalar_select %p163, %s19, 1
        %s165 = smul.addr %s164, 8
        %s166 = scalar_lea.vmem %s0, %s165
        %p167 = pneg %p40
        %p168 = pneg %p37
        %p169 = pneg %p61
        %p170 = pneg %p58
        %p171 = pneg %p87
        %p172 = pneg %p84
        %s173 = sand.u32 %s74, 1
        %s174 = scalar_lea.sflag [#allocation4], %s173
        %s175 = sand.u32 %s74, 1
        %s176 = smul.addr %s175, 8
        %s177 = scalar_lea.vmem [#allocation5], %s176
        %p178 = pneg %p113
        %p179 = pneg %p110
        %p180 = scmp.lt.s32.totalorder %s19, 1
        %s181 = scalar_select %p180, %s19, 1
        %s182 = scalar_lea.vmem %s3, %s181
        %p183 = scmp.lt.s32.totalorder %s19, 1
        %s184 = scalar_select %p183, %s19, 1
        %s185 = smul.addr %s184, 8
        %s186 = scalar_lea.vmem %s0, %s185
        %p187 = scmp.lt.s32.totalorder %s19, 1
        %s188 = scalar_select %p187, %s19, 1
        %s189 = scalar_lea.vmem %s3, %s188
        %v190 = vld [vmem:[%s186] sm:$0xff]
        %v191 = vld [vmem:[#allocation2] sm:$0xff]
        %v192 = vld [vmem:[#allocation2 + $0x8] sm:$0xff]
        %v193 = vld [vmem:[#allocation2 + $0x10] sm:$0xff]
        %v194 = vld [vmem:[#allocation2 + $0x18] sm:$0xff]
        %v195 = vld [vmem:[#allocation2 + $0x20] sm:$0xff]
        %v196 = vld [vmem:[#allocation2 + $0x28] sm:$0xff]
        %v197 = vld [vmem:[#allocation2 + $0x30] sm:$0xff]
        %v198 = vld [vmem:[#allocation2 + $0x38] sm:$0xff]
        %v199 = vld [vmem:[#allocation2 + $0x40] sm:$0xff]
        %v200 = vld [vmem:[#allocation2 + $0x48] sm:$0xff]
        %v201 = vld [vmem:[#allocation2 + $0x50] sm:$0xff]
        %v202 = vld [vmem:[#allocation2 + $0x58] sm:$0xff]
        %v203 = vld [vmem:[#allocation2 + $0x60] sm:$0xff]
        %v204 = vld [vmem:[#allocation2 + $0x68] sm:$0xff]
        %v205 = vld [vmem:[#allocation2 + $0x70] sm:$0xff]
        %v206 = vld [vmem:[#allocation2 + $0x78] sm:$0xff]
        %v207 = vlaneseq
        %v208 = vand.u32 %v207, 127
        %209 = vset.pattern.permute.xlu0 0
        %210 = vperm.xlu0 %209, %v190
        %v211 = vpop.permute.xlu0 %210
        %vm212 = vcmp.eq.s32.totalorder %v208, %v211
        %v213 = vsel %vm212, 1, 0
        %v214 = vcvt.s32.f32 %v213
        %215 = vmatprep.subr.mxu0 0.0
        %216 = vmatpush1.msra.mxu0 %v191
        %217 = vmatprep.subr.mxu0 0.0
        %218 = vmatpush1.msra.mxu0 %v192
        %219 = vmatprep.subr.mxu0 0.0
        %220 = vmatpush1.msra.mxu0 %v193
        %221 = vmatprep.subr.mxu0 0.0
        %222 = vmatpush1.msra.mxu0 %v194
        %223 = vmatprep.subr.mxu0 0.0
        %224 = vmatpush1.msra.mxu0 %v195
        %225 = vmatprep.subr.mxu0 0.0
        %226 = vmatpush1.msra.mxu0 %v196
        %227 = vmatprep.subr.mxu0 0.0
        %228 = vmatpush1.msra.mxu0 %v197
        %229 = vmatprep.subr.mxu0 0.0
        %230 = vmatpush1.msra.mxu0 %v198
        %231 = vmatprep.subr.mxu0 0.0
        %232 = vmatpush1.msra.mxu0 %v199
        %233 = vmatprep.subr.mxu0 0.0
        %234 = vmatpush1.msra.mxu0 %v200
        %235 = vmatprep.subr.mxu0 0.0
        %236 = vmatpush1.msra.mxu0 %v201
        %237 = vmatprep.subr.mxu0 0.0
        %238 = vmatpush1.msra.mxu0 %v202
        %239 = vmatprep.subr.mxu0 0.0
        %240 = vmatpush1.msra.mxu0 %v203
        %241 = vmatprep.subr.mxu0 0.0
        %242 = vmatpush1.msra.mxu0 %v204
        %243 = vmatprep.subr.mxu0 0.0
        %244 = vmatpush1.msra.mxu0 %v205
        %245 = vmatprep.subr.mxu0 0.0
        %246 = vmatpush1.msra.mxu0 %v206
        %247 = vmatprep.subr.mxu0 0.0
        %248 = vmatpush1.msra.mxu0 0.0
        %249 = vmatprep.subr.mxu0 0.0
        %250 = vmatpush1.msra.mxu0 0.0
        %251 = vmatprep.subr.mxu0 0.0
        %252 = vmatpush1.msra.mxu0 0.0
        %253 = vmatprep.subr.mxu0 0.0
        %254 = vmatpush1.msra.mxu0 0.0
        %255 = vmatprep.subr.mxu0 0.0
        %256 = vmatpush1.msra.mxu0 0.0
        %257 = vmatprep.subr.mxu0 0.0
        %258 = vmatpush1.msra.mxu0 0.0
        %259 = vmatprep.subr.mxu0 0.0
        %260 = vmatpush1.msra.mxu0 0.0
        %261 = vmatprep.subr.mxu0 0.0
        %262 = vmatpush1.msra.mxu0 0.0
        %263 = vmatprep.subr.mxu0 0.0
        %264 = vmatpush1.msra.mxu0 0.0
        %265 = vmatprep.subr.mxu0 0.0
        %266 = vmatpush1.msra.mxu0 0.0
        %267 = vmatprep.subr.mxu0 0.0
        %268 = vmatpush1.msra.mxu0 0.0
        %269 = vmatprep.subr.mxu0 0.0
        %270 = vmatpush1.msra.mxu0 0.0
        %271 = vmatprep.subr.mxu0 0.0
        %272 = vmatpush1.msra.mxu0 0.0
        %273 = vmatprep.subr.mxu0 0.0
        %274 = vmatpush1.msra.mxu0 0.0
        %275 = vmatprep.subr.mxu0 0.0
        %276 = vmatpush1.msra.mxu0 0.0
        %277 = vmatprep.subr.mxu0 0.0
        %278 = vmatpush1.msra.mxu0 0.0
        %279 = vmatprep.mubr.f32.mxu0 0.0
        %280 = vmatmul.mubr.f32.gmra.mrb[0].mxu0 %v214
        %v281 = vpop.f32.mrb[0].mxu0
        %v282 = vadd.f32 0.0, %v281
        %v283 = vpop.f32.mrb[0].mxu0
        %284 = vdwg.mxu0
        %vm285 = vcmp.lt.s32.totalorder %v208, 65
        %v286 = vsel %vm285, %v282, -1e+30
        %287 = vmax.xlane.f32.xlu0 %v286
        %v288 = vpop.xlane.xlu0 %287
        %v289 = vsub.f32 %v286, %v288
        %v290 = vmul.f32 %v289, 1.442695
        %v291 = vpow.pop %v290
        %292 = vadd.xlane.f32.xlu0 %v291
        %v293 = vpop.xlane.xlu0 %292
        %v294 = vlog2.pop %v293
        %v295 = vmul.f32 %v294, 0.6931472
        %296 = vset.pattern.permute.xlu0 1
        %297 = vperm.xlu0 %296, %v190
        %v298 = vpop.permute.xlu0 %297
        %vm299 = vcmp.eq.s32.totalorder %v208, %v298
        %v300 = vsel %vm299, %v289, 0.0
        %301 = vadd.xlane.f32.xlu0 %v300
        %v302 = vpop.xlane.xlu0 %301
        %v303 = vsub.f32 %v295, %v302
        %304 = vst [vmem:[%s177] sm:$0xff] %v282
        %v305 = vrot.slane %v303, 4
        %v306 = vadd.f32 %v303, %v305
        %v307 = vrot.slane %v306, 2
        %v308 = vadd.f32 %v306, %v307
        %v309 = vrot.slane %v308, 1
        %v310 = vadd.f32 %v308, %v309
        %vm311 = vcmask 0
        %312 = vst.msk [vmem:[%s189] sm:$0x1] %vm311, %v310
        %s313 = sand.u32 %s74, 1
        %s314 = scalar_lea.sflag [#allocation4], %s313
        %s315 = sand.u32 %s74, 1
        %s316 = smul.addr %s315, 8
        %s317 = scalar_lea.vmem [#allocation5], %s316
        %p318 = scmp.lt.s32.totalorder %s19, 1
        %s319 = scalar_select %p318, %s19, 1
        %s320 = scalar_lea.vmem %s3, %s319
        // Predicated region
        $region33: #{tpu_custom_call.1} parent=27 // pred_check
          %p321 = pneg %p84
        $region34: #{tpu_custom_call.1} parent=27 // pred_check_branch
          %323 = sbr.rel (%p321) target = $region36
        $region35: #{tpu_custom_call.1} parent=27 // pred_region
          %s325 = ssub.s32 128, 128
          %326 = vsyncadd %s314, %s325
          %s327 = smul.addr %s19, 128
          %s328 = scalar_lea.hbm %s2, %s327
          %s330 = sshll.u32 %s317, 4
          %s331 = int_to_ptr.vmem [resolvable:$true] %s330
          %333 = dma.vmem_to_hbm [thread:$0]  %s331, 128, %s328, %s314
        $region36: #{tpu_custom_call.1} parent=27 // pred_fallthru
          _
        // Predicated region
        $region37: #{tpu_custom_call.1} parent=27 // pred_check
          %p334 = pneg %p110
        $region38: #{tpu_custom_call.1} parent=27 // pred_check_branch
          %336 = sbr.rel (%p334) target = $region40
        $region39: #{tpu_custom_call.1} parent=27 // pred_region
          _
        $region40: #{tpu_custom_call.1} parent=27 // pred_fallthru
          _
      $region28: #{tpu_custom_call.1} parent=5 // pred_fallthru
        _
      %p337 = scmp.le.s32.totalorder 2, %s14
      // Predicated region
      $region41: #{tpu_custom_call.1} parent=5 // pred_check
        %p338 = pneg %p337
      $region42: #{tpu_custom_call.1} parent=5 // pred_check_branch
        %340 = sbr.rel (%p338) target = $region44
      $region43: #{tpu_custom_call.1} parent=5 // pred_region
        %s341 = ssub.s32 %s14, 2
        // Predicated region
        $region45: #{tpu_custom_call.1} parent=43 // pred_check
          %p342 = pneg %p90
        $region46: #{tpu_custom_call.1} parent=43 // pred_check_branch
          %344 = sbr.rel (%p342) target = $region48
        $region47: #{tpu_custom_call.1} parent=43 // pred_region
          %s345 = sand.u32 %s75, 1
          %s346 = scalar_lea.sflag [#allocation4], %s345
          %s347 = sand.u32 %s75, 1
          %s348 = smul.addr %s347, 8
          %s349 = scalar_lea.vmem [#allocation5], %s348
          %350 = dma.done %s346, 128
        $region48: #{tpu_custom_call.1} parent=43 // pred_fallthru
          _
        // Predicated region
        $region49: #{tpu_custom_call.1} parent=43 // pred_check
          %p351 = pneg %p116
        $region50: #{tpu_custom_call.1} parent=43 // pred_check_branch
          %353 = sbr.rel (%p351) target = $region52
        $region51: #{tpu_custom_call.1} parent=43 // pred_region
          %p354 = scmp.lt.s32.totalorder %s20, 1
          %s355 = scalar_select %p354, %s20, 1
          %s356 = scalar_lea.vmem %s3, %s355
        $region52: #{tpu_custom_call.1} parent=43 // pred_fallthru
          _
      $region44: #{tpu_custom_call.1} parent=5 // pred_fallthru
        _
    $region6: #{tpu_custom_call.1} parent=1 // loop_footer
      %s18 = sadd.s32 1, %s14
    $region7: #{tpu_custom_call.1} parent=1 // loop_footer_branch
      %13 = sbr.rel target = $region3
    $region8: #{tpu_custom_call.1} parent=1 // loop_exit
      _
    %357 = vsyncpa [#allocation3], 1
    %s358 = scalar_lea.sflag [#allocation3], 1
    %359 = vsyncpa %s358, 1
    %360 = vsyncpa [#allocation4], 1
    %s361 = scalar_lea.sflag [#allocation4], 1
    %362 = vsyncpa %s361, 1

// kernel: tpu_custom_call.1
$region0: #{tpu_custom_call.1}
  #allocation0 [shape = 'u32[]', space=smem, size = 0x4, offset = 0x4, fixed_abs, tag = 'smem constant byte address 0x4 - core index']
  #allocation1 [shape = 'u32[144,128]{1,0:T(1,128)}', space=vmem, size = 0x12000, scoped, tag = 'internal scratch']
  %s0 = inlined_call_operand.vmem [shape: s32[16,2], index: 0, kind: input, shape index: {}]
  %s1 = inlined_call_operand.hbm [shape: f32[128,128], index: 1, kind: input, shape index: {}]
  %s2 = inlined_call_operand.hbm [shape: f32[16,128], index: 2, kind: output, shape index: {0}]
  %s3 = inlined_call_operand.vmem [shape: f32[2,1,1], index: 3, kind: output, shape index: {1}]
  %4 = xla_tuple %s2, %s3
  %s5 = sld [smem:[#allocation0]]
  $region53: #{tpu_custom_call.1} parent=0
    _
  %s7 = ssub.s32 1, %s5
  %s8 = scalar_select 0, %s7, %s5
  $region1: #{tpu_custom_call.1} parent=0
    #allocation2 [shape = 'u8[65536]{0}', space=vmem, size = 0x10000, scoped, tag = 'input window, operand 1, single buffered']
    #allocation3 [shape = 's32[2]{0}', space=sflag, size = 0x8, scoped, tag = 'scoped memory for tpu_custom_call.1']
    #allocation4 [shape = 's32[2]{0}', space=sflag, size = 0x8, scoped, tag = 'scoped memory for tpu_custom_call.1']
    #allocation5 [shape = 'u8[8192]{0}', space=vmem, size = 0x2000, scoped, tag = 'output window, operand 0']
    %9 = vsyncpa [#allocation3], 0
    %10 = vsyncpa [#allocation4], 0
    %s11 = scalar_lea.sflag [#allocation4], 1
    %12 = vsyncpa %s11, 0
    loop: start=0, step=1, limit=4
    $region2: #{tpu_custom_call.1} parent=1 // loop_pre_header
      _
    $region3: #{tpu_custom_call.1} parent=1 // loop_header
      %s14 = sphi 0, %s18
      %p15 = scmp.ge.s32.totalorder %s14, 4
      %s24 = sphi 0, %s26
      %s27 = sphi 0, %s24
      %s28 = sphi 0, %s27
      %s44 = sphi 0, %s28
      %s48 = sphi 0, %s48
      %s50 = sphi 0, %s48
      %s51 = sphi 0, %s50
      %s65 = sphi 0, %s51
      %s71 = sphi 0, %s73
      %s74 = sphi 0, %s71
      %s75 = sphi 0, %s74
      %s91 = sphi 0, %s75
      %s97 = sphi 0, %s99
      %s100 = sphi 0, %s97
      %s101 = sphi 0, %s100
      %s117 = sphi 0, %s101
    $region4: #{tpu_custom_call.1} parent=1 // loop_header_branch
      %17 = sbr.rel (%p15) target = $region8
    $region5: #{tpu_custom_call.1} parent=1 // loop_body
      %s19 = ssub.s32 %s14, 1
      %s20 = ssub.s32 %s14, 2
      %s21 = sadd.s32 %s14, 1
      %s22 = ssub.s32 %s14, %s21
      %p23 = scmp.eq.s32.totalorder %s22, 0
      %s25 = sadd.s32 %s24, 1
      %s26 = scalar_select %p23, %s24, %s25
      %p29 = pneg %p23
      %p30 = scmp.eq.s32.totalorder %s14, 1
      %p31 = por %p29, %p30
      %p32 = scmp.ne.s32.totalorder %s24, %s27
      %p33 = scmp.eq.s32.totalorder %s14, 0
      %p34 = por %p32, %p33
      %p35 = scmp.ne.s32.totalorder %s24, %s27
      %p36 = scmp.eq.s32.totalorder %s19, 1
      %p37 = por %p35, %p36
      %p38 = scmp.ne.s32.totalorder %s27, %s28
      %p39 = scmp.eq.s32.totalorder %s19, 0
      %p40 = por %p38, %p39
      %p41 = scmp.ne.s32.totalorder %s27, %s28
      %p42 = scmp.eq.s32.totalorder %s20, 1
      %p43 = por %p41, %p42
      %p45 = scmp.ne.s32.totalorder %s28, %s44
      %p46 = scmp.eq.s32.totalorder %s20, 0
      %p47 = por %p45, %p46
      %s49 = sadd.s32 %s48, 1
      %p52 = scmp.eq.s32.totalorder %s14, 1
      %p53 = scmp.ne.s32.totalorder %s48, %s50
      %p54 = scmp.eq.s32.totalorder %s14, 0
      %p55 = por %p53, %p54
      %p56 = scmp.ne.s32.totalorder %s48, %s50
      %p57 = scmp.eq.s32.totalorder %s19, 1
      %p58 = por %p56, %p57
      %p59 = scmp.ne.s32.totalorder %s50, %s51
      %p60 = scmp.eq.s32.totalorder %s19, 0
      %p61 = por %p59, %p60
      %p62 = scmp.ne.s32.totalorder %s50, %s51
      %p63 = scmp.eq.s32.totalorder %s20, 1
      %p64 = por %p62, %p63
      %p66 = scmp.ne.s32.totalorder %s51, %s65
      %p67 = scmp.eq.s32.totalorder %s20, 0
      %p68 = por %p66, %p67
      %s69 = ssub.s32 %s14, %s21
      %p70 = scmp.eq.s32.totalorder %s69, 0
      %s72 = sadd.s32 %s71, 1
      %s73 = scalar_select %p70, %s71, %s72
      %p76 = pneg %p70
      %p77 = scmp.eq.s32.totalorder %s14, 1
      %p78 = por %p76, %p77
      %p79 = scmp.ne.s32.totalorder %s71, %s74
      %p80 = scmp.eq.s32.totalorder %s14, 0
      %p81 = por %p79, %p80
      %p82 = scmp.ne.s32.totalorder %s71, %s74
      %p83 = scmp.eq.s32.totalorder %s19, 1
      %p84 = por %p82, %p83
      %p85 = scmp.ne.s32.totalorder %s74, %s75
      %p86 = scmp.eq.s32.totalorder %s19, 0
      %p87 = por %p85, %p86
      %p88 = scmp.ne.s32.totalorder %s74, %s75
      %p89 = scmp.eq.s32.totalorder %s20, 1
      %p90 = por %p88, %p89
      %p92 = scmp.ne.s32.totalorder %s75, %s91
      %p93 = scmp.eq.s32.totalorder %s20, 0
      %p94 = por %p92, %p93
      %s95 = ssub.s32 %s14, %s21
      %p96 = scmp.eq.s32.totalorder %s95, 0
      %s98 = sadd.s32 %s97, 1
      %s99 = scalar_select %p96, %s97, %s98
      %p102 = pneg %p96
      %p103 = scmp.eq.s32.totalorder %s14, 1
      %p104 = por %p102, %p103
      %p105 = scmp.ne.s32.totalorder %s97, %s100
      %p106 = scmp.eq.s32.totalorder %s14, 0
      %p107 = por %p105, %p106
      %p108 = scmp.ne.s32.totalorder %s97, %s100
      %p109 = scmp.eq.s32.totalorder %s19, 1
      %p110 = por %p108, %p109
      %p111 = scmp.ne.s32.totalorder %s100, %s101
      %p112 = scmp.eq.s32.totalorder %s19, 0
      %p113 = por %p111, %p112
      %p114 = scmp.ne.s32.totalorder %s100, %s101
      %p115 = scmp.eq.s32.totalorder %s20, 1
      %p116 = por %p114, %p115
      %p118 = scmp.ne.s32.totalorder %s101, %s117
      %p119 = scmp.eq.s32.totalorder %s20, 0
      %p120 = por %p118, %p119
      %p121 = scmp.le.s32.totalorder 1, %s14
      %p122 = scmp.lt.s32.totalorder %s14, 3
      %p123 = pnand %p121, %p122
      %p124 = pneg %p123
      // Predicated region
      $region9: #{tpu_custom_call.1} parent=5 // pred_check
        _
      $region10: #{tpu_custom_call.1} parent=5 // pred_check_branch
        %126 = sbr.rel (%p123) target = $region12
      $region11: #{tpu_custom_call.1} parent=5 // pred_region
        %s127 = ssub.s32 %s14, 1
        // Predicated region
        $region13: #{tpu_custom_call.1} parent=11 // pred_check
          %p128 = pneg %p61
        $region14: #{tpu_custom_call.1} parent=11 // pred_check_branch
          %130 = sbr.rel (%p128) target = $region16
        $region15: #{tpu_custom_call.1} parent=11 // pred_region
          %s132 = ssub.s32 2048, 2048
          %133 = vsyncadd [#allocation3], %s132
          %s134 = sshll.u32 [#allocation2], 4
          %s135 = int_to_ptr.vmem [resolvable:$true] %s134
          %140 = dma.hbm_to_vmem [thread:$0]  %s1, 2048, %s135, [#allocation3], 128, 128, 8
        $region16: #{tpu_custom_call.1} parent=11 // pred_fallthru
          _
      $region12: #{tpu_custom_call.1} parent=5 // pred_fallthru
        _
      %p141 = scmp.lt.s32.totalorder %s14, 2
      // Predicated region
      $region17: #{tpu_custom_call.1} parent=5 // pred_check
        %p142 = pneg %p141
      $region18: #{tpu_custom_call.1} parent=5 // pred_check_branch
        %144 = sbr.rel (%p142) target = $region20
      $region19: #{tpu_custom_call.1} parent=5 // pred_region
        // Predicated region
        $region21: #{tpu_custom_call.1} parent=19 // pred_check
          %p145 = pneg %p34
        $region22: #{tpu_custom_call.1} parent=19 // pred_check_branch
          %147 = sbr.rel (%p145) target = $region24
        $region23: #{tpu_custom_call.1} parent=19 // pred_region
          %p148 = scmp.lt.s32.totalorder %s14, 1
          %s149 = scalar_select %p148, %s14, 1
          %s150 = smul.addr %s149, 8
          %s151 = scalar_lea.vmem %s0, %s150
        $region24: #{tpu_custom_call.1} parent=19 // pred_fallthru
          _
      $region20: #{tpu_custom_call.1} parent=5 // pred_fallthru
        _
      %p152 = scmp.le.s32.totalorder 1, %s14
      %p153 = scmp.lt.s32.totalorder %s14, 3
      %p154 = pnand %p152, %p153
      %p155 = pneg %p154
      // Predicated region
      $region25: #{tpu_custom_call.1} parent=5 // pred_check
        _
      $region26: #{tpu_custom_call.1} parent=5 // pred_check_branch
        %157 = sbr.rel (%p154) target = $region28
      $region27: #{tpu_custom_call.1} parent=5 // pred_region
        %s158 = ssub.s32 %s14, 1
        // Predicated region
        $region29: #{tpu_custom_call.1} parent=27 // pred_check
          %p159 = pneg %p61
        $region30: #{tpu_custom_call.1} parent=27 // pred_check_branch
          %161 = sbr.rel (%p159) target = $region32
        $region31: #{tpu_custom_call.1} parent=27 // pred_region
          %162 = dma.done [#allocation3], 2048
        $region32: #{tpu_custom_call.1} parent=27 // pred_fallthru
          _
        %p163 = scmp.lt.s32.totalorder %s19, 1
        %s164 = scalar_select %p163, %s19, 1
        %s165 = smul.addr %s164, 8
        %s166 = scalar_lea.vmem %s0, %s165
        %p167 = pneg %p40
        %p168 = pneg %p37
        %p169 = pneg %p61
        %p170 = pneg %p58
        %p171 = pneg %p87
        %p172 = pneg %p84
        %s173 = sand.u32 %s74, 1
        %s174 = scalar_lea.sflag [#allocation4], %s173
        %s175 = sand.u32 %s74, 1
        %s176 = smul.addr %s175, 8
        %s177 = scalar_lea.vmem [#allocation5], %s176
        %p178 = pneg %p113
        %p179 = pneg %p110
        %p180 = scmp.lt.s32.totalorder %s19, 1
        %s181 = scalar_select %p180, %s19, 1
        %s182 = scalar_lea.vmem %s3, %s181
        %p183 = scmp.lt.s32.totalorder %s19, 1
        %s184 = scalar_select %p183, %s19, 1
        %s185 = smul.addr %s184, 8
        %s186 = scalar_lea.vmem %s0, %s185
        %p187 = scmp.lt.s32.totalorder %s19, 1
        %s188 = scalar_select %p187, %s19, 1
        %s189 = scalar_lea.vmem %s3, %s188
        %v190 = vld [vmem:[%s186] sm:$0xff]
        %v191 = vld [vmem:[#allocation2] sm:$0xff]
        %v192 = vld [vmem:[#allocation2 + $0x8] sm:$0xff]
        %v193 = vld [vmem:[#allocation2 + $0x10] sm:$0xff]
        %v194 = vld [vmem:[#allocation2 + $0x18] sm:$0xff]
        %v195 = vld [vmem:[#allocation2 + $0x20] sm:$0xff]
        %v196 = vld [vmem:[#allocation2 + $0x28] sm:$0xff]
        %v197 = vld [vmem:[#allocation2 + $0x30] sm:$0xff]
        %v198 = vld [vmem:[#allocation2 + $0x38] sm:$0xff]
        %v199 = vld [vmem:[#allocation2 + $0x40] sm:$0xff]
        %v200 = vld [vmem:[#allocation2 + $0x48] sm:$0xff]
        %v201 = vld [vmem:[#allocation2 + $0x50] sm:$0xff]
        %v202 = vld [vmem:[#allocation2 + $0x58] sm:$0xff]
        %v203 = vld [vmem:[#allocation2 + $0x60] sm:$0xff]
        %v204 = vld [vmem:[#allocation2 + $0x68] sm:$0xff]
        %v205 = vld [vmem:[#allocation2 + $0x70] sm:$0xff]
        %v206 = vld [vmem:[#allocation2 + $0x78] sm:$0xff]
        %v207 = vlaneseq
        %v208 = vand.u32 %v207, 127
        %209 = vset.pattern.permute.xlu0 0
        %210 = vperm.xlu0 %209, %v190
        %v211 = vpop.permute.xlu0 %210
        %vm212 = vcmp.eq.s32.totalorder %v208, %v211
        %v213 = vsel %vm212, 1, 0
        %v214 = vcvt.s32.f32 %v213
        %215 = vmatprep.subr.mxu0 0.0
        %216 = vmatpush1.msra.mxu0 %v191
        %217 = vmatprep.subr.mxu0 0.0
        %218 = vmatpush1.msra.mxu0 %v192
        %219 = vmatprep.subr.mxu0 0.0
        %220 = vmatpush1.msra.mxu0 %v193
        %221 = vmatprep.subr.mxu0 0.0
        %222 = vmatpush1.msra.mxu0 %v194
        %223 = vmatprep.subr.mxu0 0.0
        %224 = vmatpush1.msra.mxu0 %v195
        %225 = vmatprep.subr.mxu0 0.0
        %226 = vmatpush1.msra.mxu0 %v196
        %227 = vmatprep.subr.mxu0 0.0
        %228 = vmatpush1.msra.mxu0 %v197
        %229 = vmatprep.subr.mxu0 0.0
        %230 = vmatpush1.msra.mxu0 %v198
        %231 = vmatprep.subr.mxu0 0.0
        %232 = vmatpush1.msra.mxu0 %v199
        %233 = vmatprep.subr.mxu0 0.0
        %234 = vmatpush1.msra.mxu0 %v200
        %235 = vmatprep.subr.mxu0 0.0
        %236 = vmatpush1.msra.mxu0 %v201
        %237 = vmatprep.subr.mxu0 0.0
        %238 = vmatpush1.msra.mxu0 %v202
        %239 = vmatprep.subr.mxu0 0.0
        %240 = vmatpush1.msra.mxu0 %v203
        %241 = vmatprep.subr.mxu0 0.0
        %242 = vmatpush1.msra.mxu0 %v204
        %243 = vmatprep.subr.mxu0 0.0
        %244 = vmatpush1.msra.mxu0 %v205
        %245 = vmatprep.subr.mxu0 0.0
        %246 = vmatpush1.msra.mxu0 %v206
        %247 = vmatprep.subr.mxu0 0.0
        %248 = vmatpush1.msra.mxu0 0.0
        %249 = vmatprep.subr.mxu0 0.0
        %250 = vmatpush1.msra.mxu0 0.0
        %251 = vmatprep.subr.mxu0 0.0
        %252 = vmatpush1.msra.mxu0 0.0
        %253 = vmatprep.subr.mxu0 0.0
        %254 = vmatpush1.msra.mxu0 0.0
        %255 = vmatprep.subr.mxu0 0.0
        %256 = vmatpush1.msra.mxu0 0.0
        %257 = vmatprep.subr.mxu0 0.0
        %258 = vmatpush1.msra.mxu0 0.0
        %259 = vmatprep.subr.mxu0 0.0
        %260 = vmatpush1.msra.mxu0 0.0
        %261 = vmatprep.subr.mxu0 0.0
        %262 = vmatpush1.msra.mxu0 0.0
        %263 = vmatprep.subr.mxu0 0.0
        %264 = vmatpush1.msra.mxu0 0.0
        %265 = vmatprep.subr.mxu0 0.0
        %266 = vmatpush1.msra.mxu0 0.0
        %267 = vmatprep.subr.mxu0 0.0
        %268 = vmatpush1.msra.mxu0 0.0
        %269 = vmatprep.subr.mxu0 0.0
        %270 = vmatpush1.msra.mxu0 0.0
        %271 = vmatprep.subr.mxu0 0.0
        %272 = vmatpush1.msra.mxu0 0.0
        %273 = vmatprep.subr.mxu0 0.0
        %274 = vmatpush1.msra.mxu0 0.0
        %275 = vmatprep.subr.mxu0 0.0
        %276 = vmatpush1.msra.mxu0 0.0
        %277 = vmatprep.subr.mxu0 0.0
        %278 = vmatpush1.msra.mxu0 0.0
        %279 = vmatprep.mubr.f32.mxu0 0.0
        %280 = vmatmul.mubr.f32.gmra.mrb[0].mxu0 %v214
        %v281 = vpop.f32.mrb[0].mxu0
        %v282 = vadd.f32 0.0, %v281
        %v283 = vpop.f32.mrb[0].mxu0
        %284 = vdwg.mxu0
        %vm285 = vcmp.lt.s32.totalorder %v208, 65
        %v286 = vsel %vm285, %v282, -1e+30
        %287 = vmax.xlane.f32.xlu0 %v286
        %v288 = vpop.xlane.xlu0 %287
        %v289 = vsub.f32 %v286, %v288
        %v290 = vmul.f32 %v289, 1.442695
        %v291 = vpow.pop %v290
        %292 = vadd.xlane.f32.xlu0 %v291
        %v293 = vpop.xlane.xlu0 %292
        %v294 = vlog2.pop %v293
        %v295 = vmul.f32 %v294, 0.6931472
        %296 = vset.pattern.permute.xlu0 1
        %297 = vperm.xlu0 %296, %v190
        %v298 = vpop.permute.xlu0 %297
        %vm299 = vcmp.eq.s32.totalorder %v208, %v298
        %v300 = vsel %vm299, %v289, 0.0
        %301 = vadd.xlane.f32.xlu0 %v300
        %v302 = vpop.xlane.xlu0 %301
        %v303 = vsub.f32 %v295, %v302
        %304 = vst [vmem:[%s177] sm:$0xff] %v282
        %v305 = vrot.slane %v303, 4
        %v306 = vadd.f32 %v303, %v305
        %v307 = vrot.slane %v306, 2
        %v308 = vadd.f32 %v306, %v307
        %v309 = vrot.slane %v308, 1
        %v310 = vadd.f32 %v308, %v309
        %vm311 = vcmask 0
        %312 = vst.msk [vmem:[%s189] sm:$0x1] %vm311, %v310
        %s313 = sand.u32 %s74, 1
        %s314 = scalar_lea.sflag [#allocation4], %s313
        %s315 = sand.u32 %s74, 1
        %s316 = smul.addr %s315, 8
        %s317 = scalar_lea.vmem [#allocation5], %s316
        %p318 = scmp.lt.s32.totalorder %s19, 1
        %s319 = scalar_select %p318, %s19, 1
        %s320 = scalar_lea.vmem %s3, %s319
        // Predicated region
        $region33: #{tpu_custom_call.1} parent=27 // pred_check
          %p321 = pneg %p84
        $region34: #{tpu_custom_call.1} parent=27 // pred_check_branch
          %323 = sbr.rel (%p321) target = $region36
        $region35: #{tpu_custom_call.1} parent=27 // pred_region
          %s325 = ssub.s32 128, 128
          %326 = vsyncadd %s314, %s325
          %s327 = smul.addr %s19, 128
          %s328 = scalar_lea.hbm %s2, %s327
          %s330 = sshll.u32 %s317, 4
          %s331 = int_to_ptr.vmem [resolvable:$true] %s330
          %333 = dma.vmem_to_hbm [thread:$0]  %s331, 128, %s328, %s314
        $region36: #{tpu_custom_call.1} parent=27 // pred_fallthru
          _
        // Predicated region
        $region37: #{tpu_custom_call.1} parent=27 // pred_check
          %p334 = pneg %p110
        $region38: #{tpu_custom_call.1} parent=27 // pred_check_branch
          %336 = sbr.rel (%p334) target = $region40
        $region39: #{tpu_custom_call.1} parent=27 // pred_region
          _
        $region40: #{tpu_custom_call.1} parent=27 // pred_fallthru
          _
      $region28: #{tpu_custom_call.1} parent=5 // pred_fallthru
        _
      %p337 = scmp.le.s32.totalorder 2, %s14
      // Predicated region
      $region41: #{tpu_custom_call.1} parent=5 // pred_check
        %p338 = pneg %p337
      $region42: #{tpu_custom_call.1} parent=5 // pred_check_branch
        %340 = sbr.rel (%p338) target = $region44
      $region43: #{tpu_custom_call.1} parent=5 // pred_region
        %s341 = ssub.s32 %s14, 2
        // Predicated region
        $region45: #{tpu_custom_call.1} parent=43 // pred_check
          %p342 = pneg %p90
        $region46: #{tpu_custom_call.1} parent=43 // pred_check_branch
          %344 = sbr.rel (%p342) target = $region48
        $region47: #{tpu_custom_call.1} parent=43 // pred_region
          %s345 = sand.u32 %s75, 1
          %s346 = scalar_lea.sflag [#allocation4], %s345
          %s347 = sand.u32 %s75, 1
          %s348 = smul.addr %s347, 8
          %s349 = scalar_lea.vmem [#allocation5], %s348
          %350 = dma.done %s346, 128
        $region48: #{tpu_custom_call.1} parent=43 // pred_fallthru
          _
        // Predicated region
        $region49: #{tpu_custom_call.1} parent=43 // pred_check
          %p351 = pneg %p116
        $region50: #{tpu_custom_call.1} parent=43 // pred_check_branch
          %353 = sbr.rel (%p351) target = $region52
        $region51: #{tpu_custom_call.1} parent=43 // pred_region
          %p354 = scmp.lt.s32.totalorder %s20, 1
          %s355 = scalar_select %p354, %s20, 1
          %s356 = scalar_lea.vmem %s3, %s355
        $region52: #{tpu_custom_call.1} parent=43 // pred_fallthru
          _
      $region44: #{tpu_custom_call.1} parent=5 // pred_fallthru
        _
    $region6: #{tpu_custom_call.1} parent=1 // loop_footer
      %s18 = sadd.s32 1, %s14
    $region7: #{tpu_custom_call.1} parent=1 // loop_footer_branch
      %13 = sbr.rel target = $region3
    $region8: #{tpu_custom_call.1} parent=1 // loop_exit
      _
    %357 = vsyncpa [#allocation3], 1
    %s358 = scalar_lea.sflag [#allocation3], 1
    %359 = vsyncpa %s358, 1
    %360 = vsyncpa [#allocation4], 1
    %s361 = scalar_lea.sflag [#allocation4], 1
    %362 = vsyncpa %s361, 1

</llo_original>
